<compile_context>
chip_gen: v5e
topology: v5e:2x2
jax: 0.10.0
libtpu: 0.0.40
codegen_flags: <defaults>
</compile_context>

<pallas_src>
import math

import numpy as np
import jax
import jax.numpy as jnp
from jax.experimental import pallas as pl
from jax.experimental.pallas import tpu as pltpu


_LANE = 128
_VMEM_TILE_BUDGET = 12 * 1024 * 1024     # double-buffered in+out tile footprint
_VMEM_LIMIT = 32 * 1024 * 1024
_MAX_PACK_WIDTH = 512                    # cap on packed input width (bounds D <= 2 MiB)


def _round_up(a, b):
    return -(-a // b) * b


def _cdiv(a, b):
    return -(-a // b)


def _sublane(dtype):
    return max(1, 32 // jnp.dtype(dtype).itemsize)   # 8 f32, 16 bf16, 32 int8


def _num_tensorcores_per_chip():
    # v7x has 2 TensorCores sharing the grid; v5e/v6e have one.
    try:
        kind = jax.devices()[0].device_kind.lower()
    except Exception:
        return 1
    return 2 if ("v7" in kind or "tpu7" in kind or "7x" in kind) else 1


def _choose_tm(n_rows, row_bytes, sublane, ncores, budget):
    """Row-tile size: VMEM-budgeted, sublane-aligned, even grid split on v7x."""
    budget_rows = max(sublane, (budget // max(row_bytes, 1)) // sublane * sublane)
    if n_rows <= sublane:
        return n_rows                       # full-dim block (allowed exception)
    if ncores <= 1:
        # single TensorCore: do not split a tile that already fits VMEM
        tm = min(budget_rows, _round_up(n_rows, sublane))
    else:
        # v7x: round the number of grid steps up to an even count
        steps = max(2, _round_up(_cdiv(n_rows, budget_rows), 2))
        tm = min(budget_rows, _round_up(_cdiv(n_rows, steps), sublane))
    return max(sublane, tm)


# --------------------------------------------------------------------------
# Kernels
# --------------------------------------------------------------------------
def _crelu_kernel(x_ref, o_ref):
    # x_ref: (tm, W), o_ref: (tm, 2W)
    x = x_ref[...]
    w = x.shape[-1]
    pos = jnp.maximum(x, jnp.zeros((), x.dtype))
    o_ref[:, :w] = pos
    o_ref[:, w:] = pos - x                  # relu(-x) == relu(x) - x


def _crelu_wide_kernel(x_ref, o_ref):
    # x_ref: (tm, tw), o_ref: (tm, 2, tw) view of the (M, 2W) output
    x = x_ref[...]
    pos = jnp.maximum(x, jnp.zeros((), x.dtype))
    o_ref[:, 0, :] = pos
    o_ref[:, 1, :] = pos - x


def _crelu_packed_kernel(x_ref, d_ref, o_ref):
    # x_ref: (tm, kW) lane-dense packed rows; d_ref: (kW, 2kW) +-1 selection
    # matrix; o_ref: (tm, 2kW) lane-dense packed output.
    y = jax.lax.dot_general(
        x_ref[...], d_ref[...],
        dimension_numbers=(((1,), (0,)), ((), ())),
        preferred_element_type=jnp.float32,
        precision=jax.lax.Precision.HIGHEST)
    o_ref[...] = jnp.maximum(y, 0.0).astype(o_ref.dtype)


def _interleave_matrix(k, w, dtype):
    """D such that (packed_row @ D) = [x_0, -x_0, x_1, -x_1, ...] per W-chunk."""
    d = np.zeros((k * w, 2 * k * w), dtype=np.float32)
    cols = np.arange(w)
    for a in range(k):
        rows = a * w + cols
        d[rows, 2 * a * w + cols] = 1.0       # pos copy
        d[rows, (2 * a + 1) * w + cols] = -1.0  # neg copy
    return jnp.asarray(d, dtype=dtype)


# --------------------------------------------------------------------------
# Wrapper / path selection
# --------------------------------------------------------------------------
def _crelu_packed(x2, orig_shape, M, W, k, kw, dtype, itemsize, sub, ncores):
    Mp = M // k
    xp = x2.reshape(Mp, kw)                          # contiguous reshape (free)
    d = _interleave_matrix(k, W, dtype)
    d_bytes = 2 * kw * (2 * kw) * itemsize           # double-buffered D tile
    # per packed row: in + out double-buffered + f32 matmul result
    row_bytes = 2 * 3 * kw * itemsize + 3 * kw * 4
    budget = max(row_bytes * sub, _VMEM_TILE_BUDGET - d_bytes)
    tm = _choose_tm(Mp, row_bytes, sub, ncores, budget)
    grid_m = _cdiv(Mp, tm)

    out = pl.pallas_call(
        _crelu_packed_kernel,
        out_shape=jax.ShapeDtypeStruct((Mp, 2 * kw), dtype),
        grid_spec=pl.GridSpec(
            grid=(grid_m,),
            in_specs=[pl.BlockSpec((tm, kw), lambda i: (i, 0)),
                      pl.BlockSpec((kw, 2 * kw), lambda i: (0, 0))],
            out_specs=pl.BlockSpec((tm, 2 * kw), lambda i: (i, 0)),
        ),
        compiler_params=pltpu.CompilerParams(
            dimension_semantics=("parallel",),
            vmem_limit_bytes=_VMEM_LIMIT),
        cost_estimate=pl.CostEstimate(
            flops=2 * Mp * kw * 2 * kw + 2 * M * W,
            transcendentals=0,
            bytes_accessed=3 * M * W * itemsize),
    )(xp, d)
    return out.reshape(*orig_shape[:-1], 2 * W)


def _crelu_simple(x2, orig_shape, M, W, row_bytes, dtype, itemsize, sub, ncores):
    tm = _choose_tm(M, row_bytes, sub, ncores, _VMEM_TILE_BUDGET)
    grid_m = _cdiv(M, tm)
    out = pl.pallas_call(
        _crelu_kernel,
        out_shape=jax.ShapeDtypeStruct((M, 2 * W), dtype),
        grid_spec=pl.GridSpec(
            grid=(grid_m,),
            in_specs=[pl.BlockSpec((tm, W), lambda i: (i, 0))],
            out_specs=pl.BlockSpec((tm, 2 * W), lambda i: (i, 0)),
        ),
        compiler_params=pltpu.CompilerParams(
            dimension_semantics=("parallel",),
            vmem_limit_bytes=_VMEM_LIMIT),
        cost_estimate=pl.CostEstimate(
            flops=2 * M * W, transcendentals=0,
            bytes_accessed=3 * M * W * itemsize),
    )(x2)
    return out.reshape(*orig_shape[:-1], 2 * W)


def _crelu_wide(x2, orig_shape, M, W, dtype, itemsize, sub, ncores):
    # W-tiled path for very wide rows; output viewed as (M, 2, W) so each half
    # starts lane-aligned in its own slab.  (M, 2, W) reshapes back to (M, 2W).
    tm = sub if M > sub else M
    # out block (tm, 2, tw) pads the size-2 sublane dim to 8 in VMEM -> 8x factor
    tw = max(_LANE, (_VMEM_TILE_BUDGET // (2 * max(tm, 1) * itemsize * 9)) // _LANE * _LANE)
    tw = min(tw, _round_up(W, _LANE))
    grid = (_cdiv(M, tm), _cdiv(W, tw))
    out = pl.pallas_call(
        _crelu_wide_kernel,
        out_shape=jax.ShapeDtypeStruct((M, 2, W), dtype),
        grid_spec=pl.GridSpec(
            grid=grid,
            in_specs=[pl.BlockSpec((tm, tw), lambda i, j: (i, j))],
            out_specs=pl.BlockSpec((tm, 2, tw), lambda i, j: (i, 0, j)),
        ),
        compiler_params=pltpu.CompilerParams(
            dimension_semantics=("parallel", "parallel"),
            vmem_limit_bytes=_VMEM_LIMIT),
        cost_estimate=pl.CostEstimate(
            flops=2 * M * W, transcendentals=0,
            bytes_accessed=3 * M * W * itemsize),
    )(x2)
    return out.reshape(*orig_shape[:-1], 2 * W)


def crelu(x):
    """CReLU: concat(x, -x) on the last axis, then ReLU. Any rank >= 1."""
    orig_shape = x.shape
    W = int(orig_shape[-1])
    M = int(np.prod(orig_shape[:-1])) if len(orig_shape) > 1 else 1
    x2 = x.reshape(M, W)

    dtype = x2.dtype
    itemsize = jnp.dtype(dtype).itemsize
    sub = _sublane(dtype)
    ncores = _num_tensorcores_per_chip()

    # Small-W lane-packing fast path (float types only; needs M % k == 0).
    if W < _LANE and (dtype == jnp.float32 or dtype == jnp.bfloat16):
        kw = (W * _LANE) // math.gcd(W, _LANE)      # lcm(W, 128): dense in & out
        k = kw // W
        if kw <= _MAX_PACK_WIDTH and k >= 2 and M % k == 0:
            return _crelu_packed(x2, orig_shape, M, W, k, kw,
                                 dtype, itemsize, sub, ncores)

    w_in = _round_up(W, _LANE)
    w_out = _round_up(2 * W, _LANE)
    row_bytes = 2 * (w_in + w_out) * itemsize       # double-buffered in+out row
    if row_bytes * sub > _VMEM_TILE_BUDGET:
        return _crelu_wide(x2, orig_shape, M, W, dtype, itemsize, sub, ncores)
    return _crelu_simple(x2, orig_shape, M, W, row_bytes,
                         dtype, itemsize, sub, ncores)


if __name__ == "__main__":
    key = jax.random.PRNGKey(0)

    # Small NCHW-style input consistent with the module's usage (W=16 exercises
    # the lane-packed fast path).
    x = jax.random.normal(key, (2, 4, 16, 16), dtype=jnp.float32)
    y = jax.block_until_ready(crelu(x))
    y_ref = jnp.maximum(jnp.concatenate([x, -x], axis=-1), 0.0)
    assert y.shape == (2, 4, 16, 32), y.shape
    np.testing.assert_allclose(np.asarray(y), np.asarray(y_ref),
                               rtol=1e-6, atol=1e-6)

    # Also exercise the generic (non-packable W) fallback path.
    x3 = jax.random.normal(jax.random.PRNGKey(1), (2, 3, 20), dtype=jnp.float32)
    y3 = jax.block_until_ready(crelu(x3))
    y3_ref = jnp.maximum(jnp.concatenate([x3, -x3], axis=-1), 0.0)
    assert y3.shape == (2, 3, 40), y3.shape
    np.testing.assert_allclose(np.asarray(y3), np.asarray(y3_ref),
                               rtol=0, atol=0)

    print("KERNEL_OK")
</pallas_src>

<mosaic_0001>
module attributes {stable_mosaic.version = 11 : i64} {
  func.func @_crelu_packed_kernel(%arg0: i32, %arg1: memref<16x128xf32, #tpu.memory_space<vmem>>, %arg2: memref<128x256xf32, #tpu.memory_space<vmem>>, %arg3: memref<16x256xf32, #tpu.memory_space<vmem>>) attributes {dimension_semantics = [#tpu.dimension_semantics<parallel>], iteration_bounds = array<i64: 1>, scalar_prefetch = 0 : i64, scratch_operands = 0 : i64, tpu.core_type = #tpu.core_type<tc>, window_params = [{transform_indices = @transform_0, window_bounds = array<i64: 16, 128>}, {pipeline_mode = #tpu.pipeline_mode<synchronous>, transform_indices = @transform_1, window_bounds = array<i64: 128, 256>}, {transform_indices = @transform_2, window_bounds = array<i64: 16, 256>}]} {
    %c0 = arith.constant 0 : index
    %c0_0 = arith.constant 0 : index
    %0 = vector.load %arg1[%c0, %c0_0] : memref<16x128xf32, #tpu.memory_space<vmem>>, vector<16x128xf32>
    %c0_1 = arith.constant 0 : index
    %c0_2 = arith.constant 0 : index
    %1 = vector.load %arg2[%c0_1, %c0_2] : memref<128x256xf32, #tpu.memory_space<vmem>>, vector<128x256xf32>
    %cst = arith.constant dense<0.000000e+00> : vector<16x256xf32>
    %2 = tpu.matmul %0, %1, %cst {dimension_numbers = #tpu.dot_dimension_numbers<[1], [0], [0], [1], [0, 0, 1, 1], [], []>, precision = #tpu.contract_precision<fp32>} : vector<16x128xf32>, vector<128x256xf32>, vector<16x256xf32> -> vector<16x256xf32>
    %cst_3 = arith.constant 0.000000e+00 : f32
    %3 = vector.broadcast %cst_3 : f32 to vector<16x256xf32>
    %4 = arith.maximumf %2, %3 : vector<16x256xf32>
    %c0_4 = arith.constant 0 : index
    %c0_5 = arith.constant 0 : index
    %5 = vector.load %arg3[%c0_4, %c0_5] : memref<16x256xf32, #tpu.memory_space<vmem>>, vector<16x256xf32>
    tpu.vector_store %arg3[%c0_4, %c0_5], %4 {strides = array<i32>} : memref<16x256xf32, #tpu.memory_space<vmem>>, vector<16x256xf32>,
    return
  }
  func.func @transform_0(%arg0: i32) -> (i32, i32) {
    %c0_i32 = arith.constant 0 : i32
    %c0_i32_0 = arith.constant 0 : i32
    return %arg0, %c0_i32 : i32, i32
  }
  func.func @transform_1(%arg0: i32) -> (i32, i32) {
    %c0_i32 = arith.constant 0 : i32
    %c0_i32_0 = arith.constant 0 : i32
    %c0_i32_1 = arith.constant 0 : i32
    return %c0_i32, %c0_i32_0 : i32, i32
  }
  func.func @transform_2(%arg0: i32) -> (i32, i32) {
    %c0_i32 = arith.constant 0 : i32
    %c0_i32_0 = arith.constant 0 : i32
    return %arg0, %c0_i32 : i32, i32
  }
}

</mosaic_0001>

<llo_original>
// kernel: tpu_custom_call.1
$region0: #{tpu_custom_call.1}
  #allocation0 [shape = 'u32[]', space=smem, size = 0x4, offset = 0x4, fixed_abs, tag = 'smem constant byte address 0x4 - core index']
  #allocation1 [shape = 'u32[72,128]{1,0:T(1,128)}', space=vmem, size = 0x9000, scoped, tag = 'internal scratch']
  %s0 = inlined_call_operand.hbm [shape: f32[16,128], index: 0, kind: input, shape index: {}]
  %s1 = inlined_call_operand.hbm [shape: f32[128,256], index: 1, kind: input, shape index: {}]
  %s2 = inlined_call_operand.hbm [shape: f32[16,256], index: 2, kind: output, shape index: {}]
  %s3 = sld [smem:[#allocation0]]
  $region26: #{tpu_custom_call.1} parent=0
    _
  %s5 = ssub.s32 1, %s3
  %s6 = scalar_select 0, %s5, %s3
  $region1: #{tpu_custom_call.1} parent=0
    #allocation2 [shape = 'u8[8192]{0}', space=vmem, size = 0x2000, scoped, tag = 'input window, operand 0, single buffered']
    #allocation3 [shape = 's32[1]{0}', space=sflag, size = 0x4, scoped, tag = 'scoped memory for tpu_custom_call.1']
    #allocation4 [shape = 's32[1]{0}', space=sflag, size = 0x4, scoped, tag = 'scoped memory for tpu_custom_call.1']
    #allocation5 [shape = 'u8[131072]{0}', space=vmem, size = 0x20000, scoped, tag = 'input window, operand 1, single buffered']
    #allocation6 [shape = 's32[1]{0}', space=sflag, size = 0x4, scoped, tag = 'scoped memory for tpu_custom_call.1']
    #allocation7 [shape = 'u8[16384]{0}', space=vmem, size = 0x4000, scoped, tag = 'output window, operand 0, single buffered']
    %7 = vsyncpa [#allocation3], 0
    %8 = vsyncpa [#allocation6], 0
    %9 = vsyncpa [#allocation4], 0
    // Predicated region
    $region2: #{tpu_custom_call.1} parent=1 // pred_check
      _
    $region3: #{tpu_custom_call.1} parent=1 // pred_check_branch
      %11 = sbr.rel (0) target = $region5
    $region4: #{tpu_custom_call.1} parent=1 // pred_region
      %13 = vsyncadd [#allocation3], 0
      %s14 = sshll.u32 %s0, 4
      %s15 = int_to_ptr.hbm [resolvable:$true] %s14
      %s16 = sshll.u32 [#allocation2], 4
      %s17 = int_to_ptr.vmem [resolvable:$true] %s16
      %22 = dma.hbm_to_vmem [thread:$0]  %s15, 256, %s17, [#allocation3], 128, 128, 8
    $region5: #{tpu_custom_call.1} parent=1 // pred_fallthru
      _
    // Predicated region
    $region6: #{tpu_custom_call.1} parent=1 // pred_check
      _
    $region7: #{tpu_custom_call.1} parent=1 // pred_check_branch
      %24 = sbr.rel (0) target = $region9
    $region8: #{tpu_custom_call.1} parent=1 // pred_region
      %26 = vsyncadd [#allocation6], 0
      %s27 = sshll.u32 %s1, 4
      %s28 = int_to_ptr.hbm [resolvable:$true] %s27
      %s29 = sshll.u32 [#allocation5], 4
      %s30 = int_to_ptr.vmem [resolvable:$true] %s29
      %35 = dma.hbm_to_vmem [thread:$0]  %s28, 4096, %s30, [#allocation6], 256, 256, 16
    $region9: #{tpu_custom_call.1} parent=1 // pred_fallthru
      _
    // Predicated region
    $region10: #{tpu_custom_call.1} parent=1 // pred_check
      _
    $region11: #{tpu_custom_call.1} parent=1 // pred_check_branch
      %37 = sbr.rel (0) target = $region13
    $region12: #{tpu_custom_call.1} parent=1 // pred_region
      %39 = dma.done [#allocation3], 256
    $region13: #{tpu_custom_call.1} parent=1 // pred_fallthru
      _
    // Predicated region
    $region14: #{tpu_custom_call.1} parent=1 // pred_check
      _
    $region15: #{tpu_custom_call.1} parent=1 // pred_check_branch
      %41 = sbr.rel (0) target = $region17
    $region16: #{tpu_custom_call.1} parent=1 // pred_region
      %43 = dma.done [#allocation6], 4096
    $region17: #{tpu_custom_call.1} parent=1 // pred_fallthru
      _
    %v44 = vld [vmem:[#allocation2] sm:$0xff]
    %v45 = vld [vmem:[#allocation2 + $0x8] sm:$0xff]
    %v46 = vld [vmem:[#allocation5] sm:$0xff]
    %v47 = vld [vmem:[#allocation5 + $0x8] sm:$0xff]
    %v48 = vld [vmem:[#allocation5 + $0x10] sm:$0xff]
    %v49 = vld [vmem:[#allocation5 + $0x18] sm:$0xff]
    %v50 = vld [vmem:[#allocation5 + $0x20] sm:$0xff]
    %v51 = vld [vmem:[#allocation5 + $0x28] sm:$0xff]
    %v52 = vld [vmem:[#allocation5 + $0x30] sm:$0xff]
    %v53 = vld [vmem:[#allocation5 + $0x38] sm:$0xff]
    %v54 = vld [vmem:[#allocation5 + $0x40] sm:$0xff]
    %v55 = vld [vmem:[#allocation5 + $0x48] sm:$0xff]
    %v56 = vld [vmem:[#allocation5 + $0x50] sm:$0xff]
    %v57 = vld [vmem:[#allocation5 + $0x58] sm:$0xff]
    %v58 = vld [vmem:[#allocation5 + $0x60] sm:$0xff]
    %v59 = vld [vmem:[#allocation5 + $0x68] sm:$0xff]
    %v60 = vld [vmem:[#allocation5 + $0x70] sm:$0xff]
    %v61 = vld [vmem:[#allocation5 + $0x78] sm:$0xff]
    %v62 = vld [vmem:[#allocation5 + $0x80] sm:$0xff]
    %v63 = vld [vmem:[#allocation5 + $0x88] sm:$0xff]
    %v64 = vld [vmem:[#allocation5 + $0x90] sm:$0xff]
    %v65 = vld [vmem:[#allocation5 + $0x98] sm:$0xff]
    %v66 = vld [vmem:[#allocation5 + $0xa0] sm:$0xff]
    %v67 = vld [vmem:[#allocation5 + $0xa8] sm:$0xff]
    %v68 = vld [vmem:[#allocation5 + $0xb0] sm:$0xff]
    %v69 = vld [vmem:[#allocation5 + $0xb8] sm:$0xff]
    %v70 = vld [vmem:[#allocation5 + $0xc0] sm:$0xff]
    %v71 = vld [vmem:[#allocation5 + $0xc8] sm:$0xff]
    %v72 = vld [vmem:[#allocation5 + $0xd0] sm:$0xff]
    %v73 = vld [vmem:[#allocation5 + $0xd8] sm:$0xff]
    %v74 = vld [vmem:[#allocation5 + $0xe0] sm:$0xff]
    %v75 = vld [vmem:[#allocation5 + $0xe8] sm:$0xff]
    %v76 = vld [vmem:[#allocation5 + $0xf0] sm:$0xff]
    %v77 = vld [vmem:[#allocation5 + $0xf8] sm:$0xff]
    %v78 = vand.u32 %v76, 4294901760
    %79 = vmatpush.msra.mxu0 %v78
    %v80 = vand.u32 %v74, 4294901760
    %81 = vmatpush.msra.mxu0 %v80
    %v82 = vand.u32 %v72, 4294901760
    %83 = vmatpush.msra.mxu0 %v82
    %v84 = vand.u32 %v70, 4294901760
    %85 = vmatpush.msra.mxu0 %v84
    %v86 = vand.u32 %v68, 4294901760
    %87 = vmatpush.msra.mxu0 %v86
    %v88 = vand.u32 %v66, 4294901760
    %89 = vmatpush.msra.mxu0 %v88
    %v90 = vand.u32 %v64, 4294901760
    %91 = vmatpush.msra.mxu0 %v90
    %v92 = vand.u32 %v62, 4294901760
    %93 = vmatpush.msra.mxu0 %v92
    %v94 = vand.u32 %v60, 4294901760
    %95 = vmatpush.msra.mxu0 %v94
    %v96 = vand.u32 %v58, 4294901760
    %97 = vmatpush.msra.mxu0 %v96
    %v98 = vand.u32 %v56, 4294901760
    %99 = vmatpush.msra.mxu0 %v98
    %v100 = vand.u32 %v54, 4294901760
    %101 = vmatpush.msra.mxu0 %v100
    %v102 = vand.u32 %v52, 4294901760
    %103 = vmatpush.msra.mxu0 %v102
    %v104 = vand.u32 %v50, 4294901760
    %105 = vmatpush.msra.mxu0 %v104
    %v106 = vand.u32 %v48, 4294901760
    %107 = vmatpush.msra.mxu0 %v106
    %v108 = vand.u32 %v46, 4294901760
    %109 = vmatpush.msra.mxu0 %v108
    %v110 = vand.u32 %v44, 4294901760
    %v111 = vsub.f32 %v44, %v110
    %v112 = vand.u32 %v111, 4294901760
    %v113 = vsub.f32 %v111, %v112
    %v114 = vand.u32 %v113, 4294901760
    %115 = vmatmul.f32.gmra.mxu0 %v114
    %v116 = vpop.f32.mrf.mxu0
    %v117 = vadd.f32 0.0, %v116
    %v118 = vand.u32 %v45, 4294901760
    %v119 = vsub.f32 %v45, %v118
    %v120 = vand.u32 %v119, 4294901760
    %v121 = vsub.f32 %v119, %v120
    %v122 = vand.u32 %v121, 4294901760
    %123 = vmatmul.f32.gmra.mxu0 %v122
    %v124 = vpop.f32.mrf.mxu0
    %v125 = vadd.f32 0.0, %v124
    %126 = vdwg.mxu0
    %v127 = vand.u32 %v76, 4294901760
    %v128 = vsub.f32 %v76, %v127
    %v129 = vand.u32 %v128, 4294901760
    %v130 = vsub.f32 %v128, %v129
    %v131 = vand.u32 %v130, 4294901760
    %132 = vmatpush.msra.mxu0 %v131
    %v133 = vand.u32 %v74, 4294901760
    %v134 = vsub.f32 %v74, %v133
    %v135 = vand.u32 %v134, 4294901760
    %v136 = vsub.f32 %v134, %v135
    %v137 = vand.u32 %v136, 4294901760
    %138 = vmatpush.msra.mxu0 %v137
    %v139 = vand.u32 %v72, 4294901760
    %v140 = vsub.f32 %v72, %v139
    %v141 = vand.u32 %v140, 4294901760
    %v142 = vsub.f32 %v140, %v141
    %v143 = vand.u32 %v142, 4294901760
    %144 = vmatpush.msra.mxu0 %v143
    %v145 = vand.u32 %v70, 4294901760
    %v146 = vsub.f32 %v70, %v145
    %v147 = vand.u32 %v146, 4294901760
    %v148 = vsub.f32 %v146, %v147
    %v149 = vand.u32 %v148, 4294901760
    %150 = vmatpush.msra.mxu0 %v149
    %v151 = vand.u32 %v68, 4294901760
    %v152 = vsub.f32 %v68, %v151
    %v153 = vand.u32 %v152, 4294901760
    %v154 = vsub.f32 %v152, %v153
    %v155 = vand.u32 %v154, 4294901760
    %156 = vmatpush.msra.mxu0 %v155
    %v157 = vand.u32 %v66, 4294901760
    %v158 = vsub.f32 %v66, %v157
    %v159 = vand.u32 %v158, 4294901760
    %v160 = vsub.f32 %v158, %v159
    %v161 = vand.u32 %v160, 4294901760
    %162 = vmatpush.msra.mxu0 %v161
    %v163 = vand.u32 %v64, 4294901760
    %v164 = vsub.f32 %v64, %v163
    %v165 = vand.u32 %v164, 4294901760
    %v166 = vsub.f32 %v164, %v165
    %v167 = vand.u32 %v166, 4294901760
    %168 = vmatpush.msra.mxu0 %v167
    %v169 = vand.u32 %v62, 4294901760
    %v170 = vsub.f32 %v62, %v169
    %v171 = vand.u32 %v170, 4294901760
    %v172 = vsub.f32 %v170, %v171
    %v173 = vand.u32 %v172, 4294901760
    %174 = vmatpush.msra.mxu0 %v173
    %v175 = vand.u32 %v60, 4294901760
    %v176 = vsub.f32 %v60, %v175
    %v177 = vand.u32 %v176, 4294901760
    %v178 = vsub.f32 %v176, %v177
    %v179 = vand.u32 %v178, 4294901760
    %180 = vmatpush.msra.mxu0 %v179
    %v181 = vand.u32 %v58, 4294901760
    %v182 = vsub.f32 %v58, %v181
    %v183 = vand.u32 %v182, 4294901760
    %v184 = vsub.f32 %v182, %v183
    %v185 = vand.u32 %v184, 4294901760
    %186 = vmatpush.msra.mxu0 %v185
    %v187 = vand.u32 %v56, 4294901760
    %v188 = vsub.f32 %v56, %v187
    %v189 = vand.u32 %v188, 4294901760
    %v190 = vsub.f32 %v188, %v189
    %v191 = vand.u32 %v190, 4294901760
    %192 = vmatpush.msra.mxu0 %v191
    %v193 = vand.u32 %v54, 4294901760
    %v194 = vsub.f32 %v54, %v193
    %v195 = vand.u32 %v194, 4294901760
    %v196 = vsub.f32 %v194, %v195
    %v197 = vand.u32 %v196, 4294901760
    %198 = vmatpush.msra.mxu0 %v197
    %v199 = vand.u32 %v52, 4294901760
    %v200 = vsub.f32 %v52, %v199
    %v201 = vand.u32 %v200, 4294901760
    %v202 = vsub.f32 %v200, %v201
    %v203 = vand.u32 %v202, 4294901760
    %204 = vmatpush.msra.mxu0 %v203
    %v205 = vand.u32 %v50, 4294901760
    %v206 = vsub.f32 %v50, %v205
    %v207 = vand.u32 %v206, 4294901760
    %v208 = vsub.f32 %v206, %v207
    %v209 = vand.u32 %v208, 4294901760
    %210 = vmatpush.msra.mxu0 %v209
    %v211 = vand.u32 %v48, 4294901760
    %v212 = vsub.f32 %v48, %v211
    %v213 = vand.u32 %v212, 4294901760
    %v214 = vsub.f32 %v212, %v213
    %v215 = vand.u32 %v214, 4294901760
    %216 = vmatpush.msra.mxu0 %v215
    %v217 = vand.u32 %v46, 4294901760
    %v218 = vsub.f32 %v46, %v217
    %v219 = vand.u32 %v218, 4294901760
    %v220 = vsub.f32 %v218, %v219
    %v221 = vand.u32 %v220, 4294901760
    %222 = vmatpush.msra.mxu0 %v221
    %v223 = vand.u32 %v44, 4294901760
    %224 = vmatmul.f32.gmra.mxu0 %v223
    %v225 = vpop.f32.mrf.mxu0
    %v226 = vadd.f32 %v117, %v225
    %v227 = vand.u32 %v45, 4294901760
    %228 = vmatmul.f32.gmra.mxu0 %v227
    %v229 = vpop.f32.mrf.mxu0
    %v230 = vadd.f32 %v125, %v229
    %231 = vdwg.mxu0
    %v232 = vand.u32 %v76, 4294901760
    %v233 = vsub.f32 %v76, %v232
    %234 = vmatpush.msra.mxu0 %v233
    %v235 = vand.u32 %v74, 4294901760
    %v236 = vsub.f32 %v74, %v235
    %237 = vmatpush.msra.mxu0 %v236
    %v238 = vand.u32 %v72, 4294901760
    %v239 = vsub.f32 %v72, %v238
    %240 = vmatpush.msra.mxu0 %v239
    %v241 = vand.u32 %v70, 4294901760
    %v242 = vsub.f32 %v70, %v241
    %243 = vmatpush.msra.mxu0 %v242
    %v244 = vand.u32 %v68, 4294901760
    %v245 = vsub.f32 %v68, %v244
    %246 = vmatpush.msra.mxu0 %v245
    %v247 = vand.u32 %v66, 4294901760
    %v248 = vsub.f32 %v66, %v247
    %249 = vmatpush.msra.mxu0 %v248
    %v250 = vand.u32 %v64, 4294901760
    %v251 = vsub.f32 %v64, %v250
    %252 = vmatpush.msra.mxu0 %v251
    %v253 = vand.u32 %v62, 4294901760
    %v254 = vsub.f32 %v62, %v253
    %255 = vmatpush.msra.mxu0 %v254
    %v256 = vand.u32 %v60, 4294901760
    %v257 = vsub.f32 %v60, %v256
    %258 = vmatpush.msra.mxu0 %v257
    %v259 = vand.u32 %v58, 4294901760
    %v260 = vsub.f32 %v58, %v259
    %261 = vmatpush.msra.mxu0 %v260
    %v262 = vand.u32 %v56, 4294901760
    %v263 = vsub.f32 %v56, %v262
    %264 = vmatpush.msra.mxu0 %v263
    %v265 = vand.u32 %v54, 4294901760
    %v266 = vsub.f32 %v54, %v265
    %267 = vmatpush.msra.mxu0 %v266
    %v268 = vand.u32 %v52, 4294901760
    %v269 = vsub.f32 %v52, %v268
    %270 = vmatpush.msra.mxu0 %v269
    %v271 = vand.u32 %v50, 4294901760
    %v272 = vsub.f32 %v50, %v271
    %273 = vmatpush.msra.mxu0 %v272
    %v274 = vand.u32 %v48, 4294901760
    %v275 = vsub.f32 %v48, %v274
    %276 = vmatpush.msra.mxu0 %v275
    %v277 = vand.u32 %v46, 4294901760
    %v278 = vsub.f32 %v46, %v277
    %279 = vmatpush.msra.mxu0 %v278
    %v280 = vand.u32 %v44, 4294901760
    %v281 = vsub.f32 %v44, %v280
    %282 = vmatmul.f32.gmra.mxu0 %v281
    %v283 = vpop.f32.mrf.mxu0
    %v284 = vadd.f32 %v226, %v283
    %v285 = vand.u32 %v45, 4294901760
    %v286 = vsub.f32 %v45, %v285
    %287 = vmatmul.f32.gmra.mxu0 %v286
    %v288 = vpop.f32.mrf.mxu0
    %v289 = vadd.f32 %v230, %v288
    %290 = vdwg.mxu0
    %v291 = vand.u32 %v76, 4294901760
    %292 = vmatpush.msra.mxu0 %v291
    %v293 = vand.u32 %v74, 4294901760
    %294 = vmatpush.msra.mxu0 %v293
    %v295 = vand.u32 %v72, 4294901760
    %296 = vmatpush.msra.mxu0 %v295
    %v297 = vand.u32 %v70, 4294901760
    %298 = vmatpush.msra.mxu0 %v297
    %v299 = vand.u32 %v68, 4294901760
    %300 = vmatpush.msra.mxu0 %v299
    %v301 = vand.u32 %v66, 4294901760
    %302 = vmatpush.msra.mxu0 %v301
    %v303 = vand.u32 %v64, 4294901760
    %304 = vmatpush.msra.mxu0 %v303
    %v305 = vand.u32 %v62, 4294901760
    %306 = vmatpush.msra.mxu0 %v305
    %v307 = vand.u32 %v60, 4294901760
    %308 = vmatpush.msra.mxu0 %v307
    %v309 = vand.u32 %v58, 4294901760
    %310 = vmatpush.msra.mxu0 %v309
    %v311 = vand.u32 %v56, 4294901760
    %312 = vmatpush.msra.mxu0 %v311
    %v313 = vand.u32 %v54, 4294901760
    %314 = vmatpush.msra.mxu0 %v313
    %v315 = vand.u32 %v52, 4294901760
    %316 = vmatpush.msra.mxu0 %v315
    %v317 = vand.u32 %v50, 4294901760
    %318 = vmatpush.msra.mxu0 %v317
    %v319 = vand.u32 %v48, 4294901760
    %320 = vmatpush.msra.mxu0 %v319
    %v321 = vand.u32 %v46, 4294901760
    %322 = vmatpush.msra.mxu0 %v321
    %v323 = vand.u32 %v44, 4294901760
    %v324 = vsub.f32 %v44, %v323
    %v325 = vand.u32 %v324, 4294901760
    %326 = vmatmul.f32.gmra.mxu0 %v325
    %v327 = vpop.f32.mrf.mxu0
    %v328 = vadd.f32 %v284, %v327
    %v329 = vand.u32 %v45, 4294901760
    %v330 = vsub.f32 %v45, %v329
    %v331 = vand.u32 %v330, 4294901760
    %332 = vmatmul.f32.gmra.mxu0 %v331
    %v333 = vpop.f32.mrf.mxu0
    %v334 = vadd.f32 %v289, %v333
    %335 = vdwg.mxu0
    %v336 = vand.u32 %v76, 4294901760
    %v337 = vsub.f32 %v76, %v336
    %v338 = vand.u32 %v337, 4294901760
    %339 = vmatpush.msra.mxu0 %v338
    %v340 = vand.u32 %v74, 4294901760
    %v341 = vsub.f32 %v74, %v340
    %v342 = vand.u32 %v341, 4294901760
    %343 = vmatpush.msra.mxu0 %v342
    %v344 = vand.u32 %v72, 4294901760
    %v345 = vsub.f32 %v72, %v344
    %v346 = vand.u32 %v345, 4294901760
    %347 = vmatpush.msra.mxu0 %v346
    %v348 = vand.u32 %v70, 4294901760
    %v349 = vsub.f32 %v70, %v348
    %v350 = vand.u32 %v349, 4294901760
    %351 = vmatpush.msra.mxu0 %v350
    %v352 = vand.u32 %v68, 4294901760
    %v353 = vsub.f32 %v68, %v352
    %v354 = vand.u32 %v353, 4294901760
    %355 = vmatpush.msra.mxu0 %v354
    %v356 = vand.u32 %v66, 4294901760
    %v357 = vsub.f32 %v66, %v356
    %v358 = vand.u32 %v357, 4294901760
    %359 = vmatpush.msra.mxu0 %v358
    %v360 = vand.u32 %v64, 4294901760
    %v361 = vsub.f32 %v64, %v360
    %v362 = vand.u32 %v361, 4294901760
    %363 = vmatpush.msra.mxu0 %v362
    %v364 = vand.u32 %v62, 4294901760
    %v365 = vsub.f32 %v62, %v364
    %v366 = vand.u32 %v365, 4294901760
    %367 = vmatpush.msra.mxu0 %v366
    %v368 = vand.u32 %v60, 4294901760
    %v369 = vsub.f32 %v60, %v368
    %v370 = vand.u32 %v369, 4294901760
    %371 = vmatpush.msra.mxu0 %v370
    %v372 = vand.u32 %v58, 4294901760
    %v373 = vsub.f32 %v58, %v372
    %v374 = vand.u32 %v373, 4294901760
    %375 = vmatpush.msra.mxu0 %v374
    %v376 = vand.u32 %v56, 4294901760
    %v377 = vsub.f32 %v56, %v376
    %v378 = vand.u32 %v377, 4294901760
    %379 = vmatpush.msra.mxu0 %v378
    %v380 = vand.u32 %v54, 4294901760
    %v381 = vsub.f32 %v54, %v380
    %v382 = vand.u32 %v381, 4294901760
    %383 = vmatpush.msra.mxu0 %v382
    %v384 = vand.u32 %v52, 4294901760
    %v385 = vsub.f32 %v52, %v384
    %v386 = vand.u32 %v385, 4294901760
    %387 = vmatpush.msra.mxu0 %v386
    %v388 = vand.u32 %v50, 4294901760
    %v389 = vsub.f32 %v50, %v388
    %v390 = vand.u32 %v389, 4294901760
    %391 = vmatpush.msra.mxu0 %v390
    %v392 = vand.u32 %v48, 4294901760
    %v393 = vsub.f32 %v48, %v392
    %v394 = vand.u32 %v393, 4294901760
    %395 = vmatpush.msra.mxu0 %v394
    %v396 = vand.u32 %v46, 4294901760
    %v397 = vsub.f32 %v46, %v396
    %v398 = vand.u32 %v397, 4294901760
    %399 = vmatpush.msra.mxu0 %v398
    %v400 = vand.u32 %v44, 4294901760
    %401 = vmatmul.f32.gmra.mxu0 %v400
    %v402 = vpop.f32.mrf.mxu0
    %v403 = vadd.f32 %v328, %v402
    %v404 = vand.u32 %v45, 4294901760
    %405 = vmatmul.f32.gmra.mxu0 %v404
    %v406 = vpop.f32.mrf.mxu0
    %v407 = vadd.f32 %v334, %v406
    %408 = vdwg.mxu0
    %v409 = vand.u32 %v76, 4294901760
    %410 = vmatpush.msra.mxu0 %v409
    %v411 = vand.u32 %v74, 4294901760
    %412 = vmatpush.msra.mxu0 %v411
    %v413 = vand.u32 %v72, 4294901760
    %414 = vmatpush.msra.mxu0 %v413
    %v415 = vand.u32 %v70, 4294901760
    %416 = vmatpush.msra.mxu0 %v415
    %v417 = vand.u32 %v68, 4294901760
    %418 = vmatpush.msra.mxu0 %v417
    %v419 = vand.u32 %v66, 4294901760
    %420 = vmatpush.msra.mxu0 %v419
    %v421 = vand.u32 %v64, 4294901760
    %422 = vmatpush.msra.mxu0 %v421
    %v423 = vand.u32 %v62, 4294901760
    %424 = vmatpush.msra.mxu0 %v423
    %v425 = vand.u32 %v60, 4294901760
    %426 = vmatpush.msra.mxu0 %v425
    %v427 = vand.u32 %v58, 4294901760
    %428 = vmatpush.msra.mxu0 %v427
    %v429 = vand.u32 %v56, 4294901760
    %430 = vmatpush.msra.mxu0 %v429
    %v431 = vand.u32 %v54, 4294901760
    %432 = vmatpush.msra.mxu0 %v431
    %v433 = vand.u32 %v52, 4294901760
    %434 = vmatpush.msra.mxu0 %v433
    %v435 = vand.u32 %v50, 4294901760
    %436 = vmatpush.msra.mxu0 %v435
    %v437 = vand.u32 %v48, 4294901760
    %438 = vmatpush.msra.mxu0 %v437
    %v439 = vand.u32 %v46, 4294901760
    %440 = vmatpush.msra.mxu0 %v439
    %v441 = vand.u32 %v44, 4294901760
    %442 = vmatmul.f32.gmra.mxu0 %v441
    %v443 = vpop.f32.mrf.mxu0
    %v444 = vadd.f32 %v403, %v443
    %v445 = vand.u32 %v45, 4294901760
    %446 = vmatmul.f32.gmra.mxu0 %v445
    %v447 = vpop.f32.mrf.mxu0
    %v448 = vadd.f32 %v407, %v447
    %449 = vdwg.mxu0
    %v450 = vand.u32 %v77, 4294901760
    %451 = vmatpush.msra.mxu0 %v450
    %v452 = vand.u32 %v75, 4294901760
    %453 = vmatpush.msra.mxu0 %v452
    %v454 = vand.u32 %v73, 4294901760
    %455 = vmatpush.msra.mxu0 %v454
    %v456 = vand.u32 %v71, 4294901760
    %457 = vmatpush.msra.mxu0 %v456
    %v458 = vand.u32 %v69, 4294901760
    %459 = vmatpush.msra.mxu0 %v458
    %v460 = vand.u32 %v67, 4294901760
    %461 = vmatpush.msra.mxu0 %v460
    %v462 = vand.u32 %v65, 4294901760
    %463 = vmatpush.msra.mxu0 %v462
    %v464 = vand.u32 %v63, 4294901760
    %465 = vmatpush.msra.mxu0 %v464
    %v466 = vand.u32 %v61, 4294901760
    %467 = vmatpush.msra.mxu0 %v466
    %v468 = vand.u32 %v59, 4294901760
    %469 = vmatpush.msra.mxu0 %v468
    %v470 = vand.u32 %v57, 4294901760
    %471 = vmatpush.msra.mxu0 %v470
    %v472 = vand.u32 %v55, 4294901760
    %473 = vmatpush.msra.mxu0 %v472
    %v474 = vand.u32 %v53, 4294901760
    %475 = vmatpush.msra.mxu0 %v474
    %v476 = vand.u32 %v51, 4294901760
    %477 = vmatpush.msra.mxu0 %v476
    %v478 = vand.u32 %v49, 4294901760
    %479 = vmatpush.msra.mxu0 %v478
    %v480 = vand.u32 %v47, 4294901760
    %481 = vmatpush.msra.mxu0 %v480
    %v482 = vand.u32 %v44, 4294901760
    %v483 = vsub.f32 %v44, %v482
    %v484 = vand.u32 %v483, 4294901760
    %v485 = vsub.f32 %v483, %v484
    %v486 = vand.u32 %v485, 4294901760
    %487 = vmatmul.f32.gmra.mxu0 %v486
    %v488 = vpop.f32.mrf.mxu0
    %v489 = vadd.f32 0.0, %v488
    %v490 = vand.u32 %v45, 4294901760
    %v491 = vsub.f32 %v45, %v490
    %v492 = vand.u32 %v491, 4294901760
    %v493 = vsub.f32 %v491, %v492
    %v494 = vand.u32 %v493, 4294901760
    %495 = vmatmul.f32.gmra.mxu0 %v494
    %v496 = vpop.f32.mrf.mxu0
    %v497 = vadd.f32 0.0, %v496
    %498 = vdwg.mxu0
    %v499 = vand.u32 %v77, 4294901760
    %v500 = vsub.f32 %v77, %v499
    %v501 = vand.u32 %v500, 4294901760
    %v502 = vsub.f32 %v500, %v501
    %v503 = vand.u32 %v502, 4294901760
    %504 = vmatpush.msra.mxu0 %v503
    %v505 = vand.u32 %v75, 4294901760
    %v506 = vsub.f32 %v75, %v505
    %v507 = vand.u32 %v506, 4294901760
    %v508 = vsub.f32 %v506, %v507
    %v509 = vand.u32 %v508, 4294901760
    %510 = vmatpush.msra.mxu0 %v509
    %v511 = vand.u32 %v73, 4294901760
    %v512 = vsub.f32 %v73, %v511
    %v513 = vand.u32 %v512, 4294901760
    %v514 = vsub.f32 %v512, %v513
    %v515 = vand.u32 %v514, 4294901760
    %516 = vmatpush.msra.mxu0 %v515
    %v517 = vand.u32 %v71, 4294901760
    %v518 = vsub.f32 %v71, %v517
    %v519 = vand.u32 %v518, 4294901760
    %v520 = vsub.f32 %v518, %v519
    %v521 = vand.u32 %v520, 4294901760
    %522 = vmatpush.msra.mxu0 %v521
    %v523 = vand.u32 %v69, 4294901760
    %v524 = vsub.f32 %v69, %v523
    %v525 = vand.u32 %v524, 4294901760
    %v526 = vsub.f32 %v524, %v525
    %v527 = vand.u32 %v526, 4294901760
    %528 = vmatpush.msra.mxu0 %v527
    %v529 = vand.u32 %v67, 4294901760
    %v530 = vsub.f32 %v67, %v529
    %v531 = vand.u32 %v530, 4294901760
    %v532 = vsub.f32 %v530, %v531
    %v533 = vand.u32 %v532, 4294901760
    %534 = vmatpush.msra.mxu0 %v533
    %v535 = vand.u32 %v65, 4294901760
    %v536 = vsub.f32 %v65, %v535
    %v537 = vand.u32 %v536, 4294901760
    %v538 = vsub.f32 %v536, %v537
    %v539 = vand.u32 %v538, 4294901760
    %540 = vmatpush.msra.mxu0 %v539
    %v541 = vand.u32 %v63, 4294901760
    %v542 = vsub.f32 %v63, %v541
    %v543 = vand.u32 %v542, 4294901760
    %v544 = vsub.f32 %v542, %v543
    %v545 = vand.u32 %v544, 4294901760
    %546 = vmatpush.msra.mxu0 %v545
    %v547 = vand.u32 %v61, 4294901760
    %v548 = vsub.f32 %v61, %v547
    %v549 = vand.u32 %v548, 4294901760
    %v550 = vsub.f32 %v548, %v549
    %v551 = vand.u32 %v550, 4294901760
    %552 = vmatpush.msra.mxu0 %v551
    %v553 = vand.u32 %v59, 4294901760
    %v554 = vsub.f32 %v59, %v553
    %v555 = vand.u32 %v554, 4294901760
    %v556 = vsub.f32 %v554, %v555
    %v557 = vand.u32 %v556, 4294901760
    %558 = vmatpush.msra.mxu0 %v557
    %v559 = vand.u32 %v57, 4294901760
    %v560 = vsub.f32 %v57, %v559
    %v561 = vand.u32 %v560, 4294901760
    %v562 = vsub.f32 %v560, %v561
    %v563 = vand.u32 %v562, 4294901760
    %564 = vmatpush.msra.mxu0 %v563
    %v565 = vand.u32 %v55, 4294901760
    %v566 = vsub.f32 %v55, %v565
    %v567 = vand.u32 %v566, 4294901760
    %v568 = vsub.f32 %v566, %v567
    %v569 = vand.u32 %v568, 4294901760
    %570 = vmatpush.msra.mxu0 %v569
    %v571 = vand.u32 %v53, 4294901760
    %v572 = vsub.f32 %v53, %v571
    %v573 = vand.u32 %v572, 4294901760
    %v574 = vsub.f32 %v572, %v573
    %v575 = vand.u32 %v574, 4294901760
    %576 = vmatpush.msra.mxu0 %v575
    %v577 = vand.u32 %v51, 4294901760
    %v578 = vsub.f32 %v51, %v577
    %v579 = vand.u32 %v578, 4294901760
    %v580 = vsub.f32 %v578, %v579
    %v581 = vand.u32 %v580, 4294901760
    %582 = vmatpush.msra.mxu0 %v581
    %v583 = vand.u32 %v49, 4294901760
    %v584 = vsub.f32 %v49, %v583
    %v585 = vand.u32 %v584, 4294901760
    %v586 = vsub.f32 %v584, %v585
    %v587 = vand.u32 %v586, 4294901760
    %588 = vmatpush.msra.mxu0 %v587
    %v589 = vand.u32 %v47, 4294901760
    %v590 = vsub.f32 %v47, %v589
    %v591 = vand.u32 %v590, 4294901760
    %v592 = vsub.f32 %v590, %v591
    %v593 = vand.u32 %v592, 4294901760
    %594 = vmatpush.msra.mxu0 %v593
    %v595 = vand.u32 %v44, 4294901760
    %596 = vmatmul.f32.gmra.mxu0 %v595
    %v597 = vpop.f32.mrf.mxu0
    %v598 = vadd.f32 %v489, %v597
    %v599 = vand.u32 %v45, 4294901760
    %600 = vmatmul.f32.gmra.mxu0 %v599
    %v601 = vpop.f32.mrf.mxu0
    %v602 = vadd.f32 %v497, %v601
    %603 = vdwg.mxu0
    %v604 = vand.u32 %v77, 4294901760
    %v605 = vsub.f32 %v77, %v604
    %606 = vmatpush.msra.mxu0 %v605
    %v607 = vand.u32 %v75, 4294901760
    %v608 = vsub.f32 %v75, %v607
    %609 = vmatpush.msra.mxu0 %v608
    %v610 = vand.u32 %v73, 4294901760
    %v611 = vsub.f32 %v73, %v610
    %612 = vmatpush.msra.mxu0 %v611
    %v613 = vand.u32 %v71, 4294901760
    %v614 = vsub.f32 %v71, %v613
    %615 = vmatpush.msra.mxu0 %v614
    %v616 = vand.u32 %v69, 4294901760
    %v617 = vsub.f32 %v69, %v616
    %618 = vmatpush.msra.mxu0 %v617
    %v619 = vand.u32 %v67, 4294901760
    %v620 = vsub.f32 %v67, %v619
    %621 = vmatpush.msra.mxu0 %v620
    %v622 = vand.u32 %v65, 4294901760
    %v623 = vsub.f32 %v65, %v622
    %624 = vmatpush.msra.mxu0 %v623
    %v625 = vand.u32 %v63, 4294901760
    %v626 = vsub.f32 %v63, %v625
    %627 = vmatpush.msra.mxu0 %v626
    %v628 = vand.u32 %v61, 4294901760
    %v629 = vsub.f32 %v61, %v628
    %630 = vmatpush.msra.mxu0 %v629
    %v631 = vand.u32 %v59, 4294901760
    %v632 = vsub.f32 %v59, %v631
    %633 = vmatpush.msra.mxu0 %v632
    %v634 = vand.u32 %v57, 4294901760
    %v635 = vsub.f32 %v57, %v634
    %636 = vmatpush.msra.mxu0 %v635
    %v637 = vand.u32 %v55, 4294901760
    %v638 = vsub.f32 %v55, %v637
    %639 = vmatpush.msra.mxu0 %v638
    %v640 = vand.u32 %v53, 4294901760
    %v641 = vsub.f32 %v53, %v640
    %642 = vmatpush.msra.mxu0 %v641
    %v643 = vand.u32 %v51, 4294901760
    %v644 = vsub.f32 %v51, %v643
    %645 = vmatpush.msra.mxu0 %v644
    %v646 = vand.u32 %v49, 4294901760
    %v647 = vsub.f32 %v49, %v646
    %648 = vmatpush.msra.mxu0 %v647
    %v649 = vand.u32 %v47, 4294901760
    %v650 = vsub.f32 %v47, %v649
    %651 = vmatpush.msra.mxu0 %v650
    %v652 = vand.u32 %v44, 4294901760
    %v653 = vsub.f32 %v44, %v652
    %654 = vmatmul.f32.gmra.mxu0 %v653
    %v655 = vpop.f32.mrf.mxu0
    %v656 = vadd.f32 %v598, %v655
    %v657 = vand.u32 %v45, 4294901760
    %v658 = vsub.f32 %v45, %v657
    %659 = vmatmul.f32.gmra.mxu0 %v658
    %v660 = vpop.f32.mrf.mxu0
    %v661 = vadd.f32 %v602, %v660
    %662 = vdwg.mxu0
    %v663 = vand.u32 %v77, 4294901760
    %664 = vmatpush.msra.mxu0 %v663
    %v665 = vand.u32 %v75, 4294901760
    %666 = vmatpush.msra.mxu0 %v665
    %v667 = vand.u32 %v73, 4294901760
    %668 = vmatpush.msra.mxu0 %v667
    %v669 = vand.u32 %v71, 4294901760
    %670 = vmatpush.msra.mxu0 %v669
    %v671 = vand.u32 %v69, 4294901760
    %672 = vmatpush.msra.mxu0 %v671
    %v673 = vand.u32 %v67, 4294901760
    %674 = vmatpush.msra.mxu0 %v673
    %v675 = vand.u32 %v65, 4294901760
    %676 = vmatpush.msra.mxu0 %v675
    %v677 = vand.u32 %v63, 4294901760
    %678 = vmatpush.msra.mxu0 %v677
    %v679 = vand.u32 %v61, 4294901760
    %680 = vmatpush.msra.mxu0 %v679
    %v681 = vand.u32 %v59, 4294901760
    %682 = vmatpush.msra.mxu0 %v681
    %v683 = vand.u32 %v57, 4294901760
    %684 = vmatpush.msra.mxu0 %v683
    %v685 = vand.u32 %v55, 4294901760
    %686 = vmatpush.msra.mxu0 %v685
    %v687 = vand.u32 %v53, 4294901760
    %688 = vmatpush.msra.mxu0 %v687
    %v689 = vand.u32 %v51, 4294901760
    %690 = vmatpush.msra.mxu0 %v689
    %v691 = vand.u32 %v49, 4294901760
    %692 = vmatpush.msra.mxu0 %v691
    %v693 = vand.u32 %v47, 4294901760
    %694 = vmatpush.msra.mxu0 %v693
    %v695 = vand.u32 %v44, 4294901760
    %v696 = vsub.f32 %v44, %v695
    %v697 = vand.u32 %v696, 4294901760
    %698 = vmatmul.f32.gmra.mxu0 %v697
    %v699 = vpop.f32.mrf.mxu0
    %v700 = vadd.f32 %v656, %v699
    %v701 = vand.u32 %v45, 4294901760
    %v702 = vsub.f32 %v45, %v701
    %v703 = vand.u32 %v702, 4294901760
    %704 = vmatmul.f32.gmra.mxu0 %v703
    %v705 = vpop.f32.mrf.mxu0
    %v706 = vadd.f32 %v661, %v705
    %707 = vdwg.mxu0
    %v708 = vand.u32 %v77, 4294901760
    %v709 = vsub.f32 %v77, %v708
    %v710 = vand.u32 %v709, 4294901760
    %711 = vmatpush.msra.mxu0 %v710
    %v712 = vand.u32 %v75, 4294901760
    %v713 = vsub.f32 %v75, %v712
    %v714 = vand.u32 %v713, 4294901760
    %715 = vmatpush.msra.mxu0 %v714
    %v716 = vand.u32 %v73, 4294901760
    %v717 = vsub.f32 %v73, %v716
    %v718 = vand.u32 %v717, 4294901760
    %719 = vmatpush.msra.mxu0 %v718
    %v720 = vand.u32 %v71, 4294901760
    %v721 = vsub.f32 %v71, %v720
    %v722 = vand.u32 %v721, 4294901760
    %723 = vmatpush.msra.mxu0 %v722
    %v724 = vand.u32 %v69, 4294901760
    %v725 = vsub.f32 %v69, %v724
    %v726 = vand.u32 %v725, 4294901760
    %727 = vmatpush.msra.mxu0 %v726
    %v728 = vand.u32 %v67, 4294901760
    %v729 = vsub.f32 %v67, %v728
    %v730 = vand.u32 %v729, 4294901760
    %731 = vmatpush.msra.mxu0 %v730
    %v732 = vand.u32 %v65, 4294901760
    %v733 = vsub.f32 %v65, %v732
    %v734 = vand.u32 %v733, 4294901760
    %735 = vmatpush.msra.mxu0 %v734
    %v736 = vand.u32 %v63, 4294901760
    %v737 = vsub.f32 %v63, %v736
    %v738 = vand.u32 %v737, 4294901760
    %739 = vmatpush.msra.mxu0 %v738
    %v740 = vand.u32 %v61, 4294901760
    %v741 = vsub.f32 %v61, %v740
    %v742 = vand.u32 %v741, 4294901760
    %743 = vmatpush.msra.mxu0 %v742
    %v744 = vand.u32 %v59, 4294901760
    %v745 = vsub.f32 %v59, %v744
    %v746 = vand.u32 %v745, 4294901760
    %747 = vmatpush.msra.mxu0 %v746
    %v748 = vand.u32 %v57, 4294901760
    %v749 = vsub.f32 %v57, %v748
    %v750 = vand.u32 %v749, 4294901760
    %751 = vmatpush.msra.mxu0 %v750
    %v752 = vand.u32 %v55, 4294901760
    %v753 = vsub.f32 %v55, %v752
    %v754 = vand.u32 %v753, 4294901760
    %755 = vmatpush.msra.mxu0 %v754
    %v756 = vand.u32 %v53, 4294901760
    %v757 = vsub.f32 %v53, %v756
    %v758 = vand.u32 %v757, 4294901760
    %759 = vmatpush.msra.mxu0 %v758
    %v760 = vand.u32 %v51, 4294901760
    %v761 = vsub.f32 %v51, %v760
    %v762 = vand.u32 %v761, 4294901760
    %763 = vmatpush.msra.mxu0 %v762
    %v764 = vand.u32 %v49, 4294901760
    %v765 = vsub.f32 %v49, %v764
    %v766 = vand.u32 %v765, 4294901760
    %767 = vmatpush.msra.mxu0 %v766
    %v768 = vand.u32 %v47, 4294901760
    %v769 = vsub.f32 %v47, %v768
    %v770 = vand.u32 %v769, 4294901760
    %771 = vmatpush.msra.mxu0 %v770
    %v772 = vand.u32 %v44, 4294901760
    %773 = vmatmul.f32.gmra.mxu0 %v772
    %v774 = vpop.f32.mrf.mxu0
    %v775 = vadd.f32 %v700, %v774
    %v776 = vand.u32 %v45, 4294901760
    %777 = vmatmul.f32.gmra.mxu0 %v776
    %v778 = vpop.f32.mrf.mxu0
    %v779 = vadd.f32 %v706, %v778
    %780 = vdwg.mxu0
    %v781 = vand.u32 %v77, 4294901760
    %782 = vmatpush.msra.mxu0 %v781
    %v783 = vand.u32 %v75, 4294901760
    %784 = vmatpush.msra.mxu0 %v783
    %v785 = vand.u32 %v73, 4294901760
    %786 = vmatpush.msra.mxu0 %v785
    %v787 = vand.u32 %v71, 4294901760
    %788 = vmatpush.msra.mxu0 %v787
    %v789 = vand.u32 %v69, 4294901760
    %790 = vmatpush.msra.mxu0 %v789
    %v791 = vand.u32 %v67, 4294901760
    %792 = vmatpush.msra.mxu0 %v791
    %v793 = vand.u32 %v65, 4294901760
    %794 = vmatpush.msra.mxu0 %v793
    %v795 = vand.u32 %v63, 4294901760
    %796 = vmatpush.msra.mxu0 %v795
    %v797 = vand.u32 %v61, 4294901760
    %798 = vmatpush.msra.mxu0 %v797
    %v799 = vand.u32 %v59, 4294901760
    %800 = vmatpush.msra.mxu0 %v799
    %v801 = vand.u32 %v57, 4294901760
    %802 = vmatpush.msra.mxu0 %v801
    %v803 = vand.u32 %v55, 4294901760
    %804 = vmatpush.msra.mxu0 %v803
    %v805 = vand.u32 %v53, 4294901760
    %806 = vmatpush.msra.mxu0 %v805
    %v807 = vand.u32 %v51, 4294901760
    %808 = vmatpush.msra.mxu0 %v807
    %v809 = vand.u32 %v49, 4294901760
    %810 = vmatpush.msra.mxu0 %v809
    %v811 = vand.u32 %v47, 4294901760
    %812 = vmatpush.msra.mxu0 %v811
    %v813 = vand.u32 %v44, 4294901760
    %814 = vmatmul.f32.gmra.mxu0 %v813
    %v815 = vpop.f32.mrf.mxu0
    %v816 = vadd.f32 %v775, %v815
    %v817 = vand.u32 %v45, 4294901760
    %818 = vmatmul.f32.gmra.mxu0 %v817
    %v819 = vpop.f32.mrf.mxu0
    %v820 = vadd.f32 %v779, %v819
    %821 = vdwg.mxu0
    %v822 = vmax.f32 %v444, 0.0
    %v823 = vmax.f32 %v816, 0.0
    %v824 = vmax.f32 %v448, 0.0
    %v825 = vmax.f32 %v820, 0.0
    %826 = vst [vmem:[#allocation7] sm:$0xff] %v822
    %827 = vst [vmem:[#allocation7 + $0x8] sm:$0xff] %v823
    %828 = vst [vmem:[#allocation7 + $0x10] sm:$0xff] %v824
    %829 = vst [vmem:[#allocation7 + $0x18] sm:$0xff] %v825
    // Predicated region
    $region18: #{tpu_custom_call.1} parent=1 // pred_check
      _
    $region19: #{tpu_custom_call.1} parent=1 // pred_check_branch
      %831 = sbr.rel (0) target = $region21
    $region20: #{tpu_custom_call.1} parent=1 // pred_region
      %833 = vsyncadd [#allocation4], 0
      %s834 = sshll.u32 [#allocation7], 4
      %s835 = int_to_ptr.vmem [resolvable:$true] %s834
      %s836 = sshll.u32 %s2, 4
      %s837 = int_to_ptr.hbm [resolvable:$true] %s836
      %842 = dma.vmem_to_hbm [thread:$0]  %s835, 512, %s837, [#allocation4], 256, 256, 16
    $region21: #{tpu_custom_call.1} parent=1 // pred_fallthru
      _
    // Predicated region
    $region22: #{tpu_custom_call.1} parent=1 // pred_check
      _
    $region23: #{tpu_custom_call.1} parent=1 // pred_check_branch
      %844 = sbr.rel (0) target = $region25
    $region24: #{tpu_custom_call.1} parent=1 // pred_region
      %846 = dma.done [#allocation4], 512
    $region25: #{tpu_custom_call.1} parent=1 // pred_fallthru
      _
    %847 = vsyncpa [#allocation3], 1
    %848 = vsyncpa [#allocation6], 1
    %849 = vsyncpa [#allocation4], 1

</llo_original>
